<compile_context>
chip_gen: v7x
topology: tpu7x:2x2x1
jax: 0.10.0
libtpu: 0.0.40
codegen_flags: <defaults>
</compile_context>

<pallas_src>
import functools

import jax
import jax.numpy as jnp
from jax.experimental import pallas as pl
from jax.experimental.pallas import tpu as pltpu

_LANE = 128


def _round_up(v, m):
    return (v + m - 1) // m * m


def _pick_tile(total, target, align=_LANE):
    """Largest multiple of `align` that divides `total` and is <= max(target, align)."""
    t = max(min(target, total) // align * align, align)
    while total % t:
        t -= align
    return t


def _vmem_limit_bytes():
    """~half of physical VMEM: 64 MiB on 128-MiB parts (v5e/v6e), 32 MiB on v7x."""
    try:
        cap = int(pltpu.get_tpu_info().vmem_capacity_bytes)
    except Exception:
        cap = 64 << 20
    return max(min(cap // 2, 64 << 20), 32 << 20)


def _xw_kernel(x_ref, dinv_ref, w_ref, y_ref, *, normalize):
    """Y = (D^{-1/2} · normalize(X)) @ W for one row block (bf16 MXU path)."""
    x = x_ref[...].astype(jnp.float32)                      # (bm1, F_in)
    if normalize:
        # F.normalize(x, dim=1): x / max(||x||, 1e-12) == x * rsqrt(max(||x||², 1e-24))
        sq = jnp.sum(x * x, axis=1, keepdims=True)
        x = x * jax.lax.rsqrt(jnp.maximum(sq, 1e-24))       # rsqrt -> EUP slot
    x = x * dinv_ref[...]                                   # left D^{-1/2} (row scale)
    y = jnp.dot(x.astype(jnp.bfloat16), w_ref[...],         # bf16 x bf16 MXU, f32 acc
                preferred_element_type=jnp.float32)
    y_ref[...] = y.astype(y_ref.dtype)                      # bf16, lane-dense (F padded)


def _gcn_noise_kernel(adj_ref, y_ref, dinv_ref, b_ref, *rest, sigma):
    """out = D^{-1/2} · (A @ Y) + b + sigma·noise; accumulate over Â column blocks."""
    if sigma != 0.0:
        noise_ref, out_ref, acc_ref = rest
    else:
        out_ref, acc_ref = rest
    k = pl.program_id(1)

    @pl.when(k == 0)
    def _init():
        acc_ref[...] = jnp.zeros_like(acc_ref)

    # A stored as int8 0/1 in HBM (half the streaming traffic of bf16); the
    # int8 -> bf16 upcast rides in idle VPU slots, the dot stays on the fp MXU path.
    a = adj_ref[...].astype(jnp.bfloat16)
    acc_ref[...] += jnp.dot(a, y_ref[...], preferred_element_type=jnp.float32)

    @pl.when(k == pl.num_programs(1) - 1)
    def _finalize():
        h = dinv_ref[...] * acc_ref[...] + b_ref[...]       # right D^{-1/2} + bias
        if sigma != 0.0:
            h = h + sigma * noise_ref[...]                  # noisy embedding
        out_ref[...] = h.astype(out_ref.dtype)


def noisy_embedding(x, edge_index, w, b, seed, *, sigma, normalize=True,
                    block_m=1024, block_k=4096, block_m_xw=2048):
    """x: (N, F_in) f32, edge_index: (2, E) int32, w: (F_in, F_out), b: (1, F_out),
    seed: int32 scalar/(1,) — fresh per call (torch.randn-per-forward equivalent)."""
    n, f_in = x.shape
    f_out = w.shape[-1]
    sigma = float(sigma)

    f_pad = _round_up(f_out, _LANE)             # lane-dense output / W / b / noise
    n_pad = _round_up(n, _LANE)
    vmem_limit = _vmem_limit_bytes()
    budget = vmem_limit * 3 // 4                # leave headroom for double buffers

    # --- K2 tiles: rows "parallel" (>=2 blocks when possible, v7x 2 TCs), K "arbitrary"
    bm = _pick_tile(n_pad, min(block_m, max(n_pad // 2, _LANE)))
    bk = _pick_tile(n_pad, block_k)

    def _k2_bytes(bm_, bk_):
        return (2 * bm_ * bk_                  # A tile, int8, double-buffered
                + 2 * bk_ * f_pad * 2          # Y tile, bf16, double-buffered
                + bm_ * f_pad * 4              # f32 accumulator
                + 2 * bm_ * f_pad * 4          # out tile, f32, double-buffered
                + 2 * bm_ * f_pad * 4          # noise tile, f32, double-buffered
                + 4 * bm_ + 2 * f_pad * 4)     # dinv / bias
    while _k2_bytes(bm, bk) > budget and bk > _LANE:
        bk = _pick_tile(n_pad, bk // 2)
    while _k2_bytes(bm, bk) > budget and bm > _LANE:
        bm = _pick_tile(n_pad, bm // 2)

    # --- K1 tile: independent, much fatter row block (X tile is tiny per row) ---
    bm1 = _pick_tile(n_pad, block_m_xw)
    while (2 * bm1 * f_in * 4 + f_in * f_pad * 2 + 2 * bm1 * f_pad * 2
           + 2 * bm1 * 4) > budget and bm1 > _LANE:
        bm1 = _pick_tile(n_pad, bm1 // 2)

    # --- plain-JAX glue: padded 0/1 adjacency (int8, unscaled) + D^{-1/2} vector ---
    # TODO(synk): for realistic sparse graphs, replace the dense padded Â with a
    # block-sparse / scalar-prefetched gather formulation (O(E) instead of O(N²)).
    src = edge_index[0].astype(jnp.int32)
    dst = edge_index[1].astype(jnp.int32)
    diag = jnp.arange(n, dtype=jnp.int32)
    rows = jnp.concatenate([dst, diag])
    cols = jnp.concatenate([src, diag])
    # single fused scatter; .set (not .add) dedups duplicate edges / self loops
    adj = jnp.zeros((n_pad, n_pad), jnp.int8).at[rows, cols].set(1)
    deg = jnp.sum(adj, axis=1, dtype=jnp.int32).astype(jnp.float32)
    dinv = jnp.where(deg > 0.0, jax.lax.rsqrt(deg), 0.0)[:, None]   # (n_pad, 1) f32

    x_p = jnp.zeros((n_pad, f_in), jnp.float32).at[:n].set(x.astype(jnp.float32))
    w_p = jnp.zeros((f_in, f_pad), jnp.bfloat16).at[:, :f_out].set(
        w.astype(jnp.bfloat16))
    b_p = jnp.zeros((1, f_pad), jnp.float32).at[:, :f_out].set(
        jnp.reshape(b, (1, f_out)).astype(jnp.float32))

    # --- kernel 1: Y = (D^{-1/2} · normalize(X)) @ W  ->  bf16, lane-dense -------
    y = pl.pallas_call(
        functools.partial(_xw_kernel, normalize=bool(normalize)),
        out_shape=jax.ShapeDtypeStruct((n_pad, f_pad), jnp.bfloat16),
        grid=(n_pad // bm1,),
        in_specs=[
            pl.BlockSpec((bm1, f_in), lambda i: (i, 0)),     # X rows
            pl.BlockSpec((bm1, 1), lambda i: (i, 0)),        # D^{-1/2} rows
            pl.BlockSpec((f_in, f_pad), lambda i: (0, 0)),   # W (resident, bf16)
        ],
        out_specs=pl.BlockSpec((bm1, f_pad), lambda i: (i, 0)),
        compiler_params=pltpu.CompilerParams(
            dimension_semantics=("parallel",),
            vmem_limit_bytes=vmem_limit),
    )(x_p, dinv, w_p)

    # --- kernel 2: out = D^{-1/2}·(A @ Y) + b + sigma·noise  (tiled + pipelined) ---
    in_specs = [
        pl.BlockSpec((bm, bk), lambda i, k: (i, k)),         # A tile (int8)
        pl.BlockSpec((bk, f_pad), lambda i, k: (k, 0)),      # Y tile (bf16)
        pl.BlockSpec((bm, 1), lambda i, k: (i, 0)),          # D^{-1/2} rows
        pl.BlockSpec((1, f_pad), lambda i, k: (0, 0)),       # bias
    ]
    operands = [adj, y, dinv, b_p]
    if sigma != 0.0:
        # Per-call Gaussian noise (torch.randn equivalent), fused in K2's finalize.
        key = jax.random.PRNGKey(jnp.asarray(seed, jnp.int32).reshape(()))
        noise = jax.random.normal(key, (n_pad, f_pad), jnp.float32)
        in_specs.append(pl.BlockSpec((bm, f_pad), lambda i, k: (i, 0)))
        operands.append(noise)

    out = pl.pallas_call(
        functools.partial(_gcn_noise_kernel, sigma=sigma),
        out_shape=jax.ShapeDtypeStruct((n_pad, f_pad), jnp.float32),
        grid=(n_pad // bm, n_pad // bk),
        in_specs=in_specs,
        out_specs=pl.BlockSpec((bm, f_pad), lambda i, k: (i, 0)),
        scratch_shapes=[pltpu.VMEM((bm, f_pad), jnp.float32)],  # f32 accumulator
        compiler_params=pltpu.CompilerParams(
            dimension_semantics=("parallel", "arbitrary"),   # rows shard across v7x TCs
            vmem_limit_bytes=vmem_limit),
    )(*operands)

    return out[:n, :f_out].astype(x.dtype)


if __name__ == "__main__":
    key = jax.random.PRNGKey(0)
    N, F_IN, F_OUT = 8, 32, 32
    SIGMA = 0.1

    k_x, k_w, k_b, k_seed = jax.random.split(key, 4)
    x = jax.random.normal(k_x, (N, F_IN), dtype=jnp.float32)

    # small bidirectional ring graph, edge_index shape (2, 2*N)
    src = jnp.arange(N, dtype=jnp.int32)
    dst = (src + 1) % N
    edge_index = jnp.stack([jnp.concatenate([src, dst]),
                            jnp.concatenate([dst, src])], axis=0)

    # deterministic GCN-layer parameters (the abstract `gnn` instantiated here)
    w = jax.random.normal(k_w, (F_IN, F_OUT), dtype=jnp.float32) / jnp.sqrt(F_IN)
    b = jax.random.normal(k_b, (1, F_OUT), dtype=jnp.float32) * 0.01
    seed = jax.random.randint(k_seed, (1,), 0, jnp.iinfo(jnp.int32).max,
                              dtype=jnp.int32)

    fwd_noisy = jax.jit(functools.partial(noisy_embedding, sigma=SIGMA, normalize=True))
    fwd_clean = jax.jit(functools.partial(noisy_embedding, sigma=0.0, normalize=True))

    # correctness: sigma=0 path vs pure-JAX GCN reference (bf16 MXU path => ~1e-2 tol)
    out_clean = fwd_clean(x, edge_index, w, b, seed)
    xn = x / jnp.maximum(jnp.linalg.norm(x, axis=1, keepdims=True), 1e-12)
    a = jnp.zeros((N, N), jnp.float32).at[edge_index[1], edge_index[0]].set(1.0)
    a = a.at[jnp.arange(N), jnp.arange(N)].set(1.0)
    di = 1.0 / jnp.sqrt(jnp.sum(a, axis=1))
    ref = (a * di[:, None] * di[None, :]) @ xn @ w + b
    assert jnp.allclose(out_clean, ref, atol=5e-2, rtol=5e-2), \
        float(jnp.max(jnp.abs(out_clean - ref)))

    # noisy forward (torch.randn * sigma equivalent, noise fused into the GCN kernel)
    out = fwd_noisy(x, edge_index, w, b, seed)
    jax.block_until_ready(out)
    assert out.shape == (N, F_OUT) and out.dtype == jnp.float32
    assert bool(jnp.all(jnp.isfinite(out)))
    diff = jnp.abs(out - out_clean)
    assert float(jnp.max(diff)) > 0.0 and float(jnp.max(diff)) < 6.0 * SIGMA
    print("KERNEL_OK")
</pallas_src>

<mosaic_0001>
module attributes {stable_mosaic.version = 11 : i64} {
  func.func @_gcn_noise_kernel(%arg0: i32, %arg1: i32, %arg2: memref<128x128xi8, #tpu.memory_space<vmem>>, %arg3: memref<128x128xbf16, #tpu.memory_space<vmem>>, %arg4: memref<128x1xf32, #tpu.memory_space<vmem>>, %arg5: memref<1x128xf32, #tpu.memory_space<vmem>>, %arg6: memref<128x128xf32, #tpu.memory_space<vmem>>, %arg7: memref<128x128xf32, #tpu.memory_space<vmem>>) attributes {dimension_semantics = [#tpu.dimension_semantics<parallel>, #tpu.dimension_semantics<arbitrary>], iteration_bounds = array<i64: 1, 1>, scalar_prefetch = 0 : i64, scratch_operands = 1 : i64, tpu.core_type = #tpu.core_type<tc>, window_params = [{transform_indices = @transform_0, window_bounds = array<i64: 128, 128>}, {transform_indices = @transform_1, window_bounds = array<i64: 128, 128>}, {transform_indices = @transform_2, window_bounds = array<i64: 128, 1>}, {pipeline_mode = #tpu.pipeline_mode<synchronous>, transform_indices = @transform_3, window_bounds = array<i64: 1, 128>}, {transform_indices = @transform_4, window_bounds = array<i64: 128, 128>}]} {
    %c0_i32 = arith.constant 0 : i32
    %0 = arith.cmpi eq, %arg1, %c0_i32 : i32
    %1 = arith.extui %0 : i1 to i32
    %c0_i32_0 = arith.constant 0 : i32
    %2 = arith.cmpi ne, %1, %c0_i32_0 : i32
    scf.if %2 {
      %cst_10 = arith.constant 0.000000e+00 : f32
      %13 = vector.broadcast %cst_10 : f32 to vector<128x128xf32>
      %c0_11 = arith.constant 0 : index
      %c0_12 = arith.constant 0 : index
      %14 = vector.load %arg7[%c0_11, %c0_12] : memref<128x128xf32, #tpu.memory_space<vmem>>, vector<128x128xf32>
      tpu.vector_store %arg7[%c0_11, %c0_12], %13 {strides = array<i32>} : memref<128x128xf32, #tpu.memory_space<vmem>>, vector<128x128xf32>,
    } else {
    }
    %c0 = arith.constant 0 : index
    %c0_1 = arith.constant 0 : index
    %3 = vector.load %arg2[%c0, %c0_1] : memref<128x128xi8, #tpu.memory_space<vmem>>, vector<128x128xi8>
    %4 = arith.sitofp %3 : vector<128x128xi8> to vector<128x128xbf16>
    %c0_2 = arith.constant 0 : index
    %c0_3 = arith.constant 0 : index
    %5 = vector.load %arg7[%c0_2, %c0_3] : memref<128x128xf32, #tpu.memory_space<vmem>>, vector<128x128xf32>
    %c0_4 = arith.constant 0 : index
    %c0_5 = arith.constant 0 : index
    %6 = vector.load %arg3[%c0_4, %c0_5] : memref<128x128xbf16, #tpu.memory_space<vmem>>, vector<128x128xbf16>
    %cst = arith.constant dense<0.000000e+00> : vector<128x128xf32>
    %7 = tpu.matmul %4, %6, %cst {dimension_numbers = #tpu.dot_dimension_numbers<[1], [0], [0], [1], [0, 0, 1, 1], [], []>} : vector<128x128xbf16>, vector<128x128xbf16>, vector<128x128xf32> -> vector<128x128xf32>
    %8 = arith.addf %5, %7 : vector<128x128xf32>
    %c0_6 = arith.constant 0 : index
    %c0_7 = arith.constant 0 : index
    %9 = vector.load %arg7[%c0_6, %c0_7] : memref<128x128xf32, #tpu.memory_space<vmem>>, vector<128x128xf32>
    tpu.vector_store %arg7[%c0_6, %c0_7], %8 {strides = array<i32>} : memref<128x128xf32, #tpu.memory_space<vmem>>, vector<128x128xf32>,
    %c0_i32_8 = arith.constant 0 : i32
    %10 = arith.cmpi eq, %arg1, %c0_i32_8 : i32
    %11 = arith.extui %10 : i1 to i32
    %c0_i32_9 = arith.constant 0 : i32
    %12 = arith.cmpi ne, %11, %c0_i32_9 : i32
    scf.if %12 {
      %c0_10 = arith.constant 0 : index
      %c0_11 = arith.constant 0 : index
      %13 = vector.load %arg4[%c0_10, %c0_11] : memref<128x1xf32, #tpu.memory_space<vmem>>, vector<128x1xf32>
      %c0_12 = arith.constant 0 : index
      %c0_13 = arith.constant 0 : index
      %14 = vector.load %arg7[%c0_12, %c0_13] : memref<128x128xf32, #tpu.memory_space<vmem>>, vector<128x128xf32>
      %15 = vector.broadcast %13 : vector<128x1xf32> to vector<128x128xf32>
      %16 = arith.mulf %15, %14 : vector<128x128xf32>
      %c0_14 = arith.constant 0 : index
      %c0_15 = arith.constant 0 : index
      %17 = vector.load %arg5[%c0_14, %c0_15] : memref<1x128xf32, #tpu.memory_space<vmem>>, vector<1x128xf32>
      %18 = vector.broadcast %17 : vector<1x128xf32> to vector<128x128xf32>
      %19 = arith.addf %16, %18 : vector<128x128xf32>
      %c0_16 = arith.constant 0 : index
      %c0_17 = arith.constant 0 : index
      %20 = vector.load %arg6[%c0_16, %c0_17] : memref<128x128xf32, #tpu.memory_space<vmem>>, vector<128x128xf32>
      tpu.vector_store %arg6[%c0_16, %c0_17], %19 {strides = array<i32>} : memref<128x128xf32, #tpu.memory_space<vmem>>, vector<128x128xf32>,
    } else {
    }
    return
  }
  func.func @transform_0(%arg0: i32, %arg1: i32) -> (i32, i32) {
    %c0_i32 = arith.constant 0 : i32
    return %arg0, %arg1 : i32, i32
  }
  func.func @transform_1(%arg0: i32, %arg1: i32) -> (i32, i32) {
    %c0_i32 = arith.constant 0 : i32
    %c0_i32_0 = arith.constant 0 : i32
    return %arg1, %c0_i32 : i32, i32
  }
  func.func @transform_2(%arg0: i32, %arg1: i32) -> (i32, i32) {
    %c0_i32 = arith.constant 0 : i32
    %c0_i32_0 = arith.constant 0 : i32
    return %arg0, %c0_i32 : i32, i32
  }
  func.func @transform_3(%arg0: i32, %arg1: i32) -> (i32, i32) {
    %c0_i32 = arith.constant 0 : i32
    %c0_i32_0 = arith.constant 0 : i32
    %c0_i32_1 = arith.constant 0 : i32
    return %c0_i32, %c0_i32_0 : i32, i32
  }
  func.func @transform_4(%arg0: i32, %arg1: i32) -> (i32, i32) {
    %c0_i32 = arith.constant 0 : i32
    %c0_i32_0 = arith.constant 0 : i32
    return %arg0, %c0_i32 : i32, i32
  }
}

module attributes {stable_mosaic.version = 11 : i64} {
  func.func @_xw_kernel(%arg0: i32, %arg1: memref<128x32xf32, #tpu.memory_space<vmem>>, %arg2: memref<128x1xf32, #tpu.memory_space<vmem>>, %arg3: memref<32x128xbf16, #tpu.memory_space<vmem>>, %arg4: memref<128x128xbf16, #tpu.memory_space<vmem>>) attributes {dimension_semantics = [#tpu.dimension_semantics<parallel>], iteration_bounds = array<i64: 1>, scalar_prefetch = 0 : i64, scratch_operands = 0 : i64, tpu.core_type = #tpu.core_type<tc>, window_params = [{transform_indices = @transform_0, window_bounds = array<i64: 128, 32>}, {transform_indices = @transform_1, window_bounds = array<i64: 128, 1>}, {pipeline_mode = #tpu.pipeline_mode<synchronous>, transform_indices = @transform_2, window_bounds = array<i64: 32, 128>}, {transform_indices = @transform_3, window_bounds = array<i64: 128, 128>}]} {
    %c0 = arith.constant 0 : index
    %c0_0 = arith.constant 0 : index
    %0 = vector.load %arg1[%c0, %c0_0] : memref<128x32xf32, #tpu.memory_space<vmem>>, vector<128x32xf32>
    %1 = arith.mulf %0, %0 : vector<128x32xf32>
    %cst = arith.constant dense<0.000000e+00> : vector<128xf32>
    %2 = vector.multi_reduction <add>, %1, %cst [1] : vector<128x32xf32> to vector<128xf32>
    %3 = vector.shape_cast %2 : vector<128xf32> to vector<128x1xf32>
    %cst_1 = arith.constant 1.000000e-24 : f32
    %4 = vector.broadcast %cst_1 : f32 to vector<128x1xf32>
    %5 = arith.maximumf %3, %4 : vector<128x1xf32>
    %6 = math.rsqrt %5 : vector<128x1xf32>
    %7 = vector.broadcast %6 : vector<128x1xf32> to vector<128x32xf32>
    %8 = arith.mulf %0, %7 : vector<128x32xf32>
    %c0_2 = arith.constant 0 : index
    %c0_3 = arith.constant 0 : index
    %9 = vector.load %arg2[%c0_2, %c0_3] : memref<128x1xf32, #tpu.memory_space<vmem>>, vector<128x1xf32>
    %10 = vector.broadcast %9 : vector<128x1xf32> to vector<128x32xf32>
    %11 = arith.mulf %8, %10 : vector<128x32xf32>
    %12 = arith.truncf %11 : vector<128x32xf32> to vector<128x32xbf16>
    %c0_4 = arith.constant 0 : index
    %c0_5 = arith.constant 0 : index
    %13 = vector.load %arg3[%c0_4, %c0_5] : memref<32x128xbf16, #tpu.memory_space<vmem>>, vector<32x128xbf16>
    %cst_6 = arith.constant dense<0.000000e+00> : vector<128x128xf32>
    %14 = tpu.matmul %12, %13, %cst_6 {dimension_numbers = #tpu.dot_dimension_numbers<[1], [0], [0], [1], [0, 0, 1, 1], [], []>} : vector<128x32xbf16>, vector<32x128xbf16>, vector<128x128xf32> -> vector<128x128xf32>
    %15 = arith.truncf %14 : vector<128x128xf32> to vector<128x128xbf16>
    %c0_7 = arith.constant 0 : index
    %c0_8 = arith.constant 0 : index
    %16 = vector.load %arg4[%c0_7, %c0_8] : memref<128x128xbf16, #tpu.memory_space<vmem>>, vector<128x128xbf16>
    tpu.vector_store %arg4[%c0_7, %c0_8], %15 {strides = array<i32>} : memref<128x128xbf16, #tpu.memory_space<vmem>>, vector<128x128xbf16>,
    return
  }
  func.func @transform_0(%arg0: i32) -> (i32, i32) {
    %c0_i32 = arith.constant 0 : i32
    %c0_i32_0 = arith.constant 0 : i32
    return %arg0, %c0_i32 : i32, i32
  }
  func.func @transform_1(%arg0: i32) -> (i32, i32) {
    %c0_i32 = arith.constant 0 : i32
    %c0_i32_0 = arith.constant 0 : i32
    return %arg0, %c0_i32 : i32, i32
  }
  func.func @transform_2(%arg0: i32) -> (i32, i32) {
    %c0_i32 = arith.constant 0 : i32
    %c0_i32_0 = arith.constant 0 : i32
    %c0_i32_1 = arith.constant 0 : i32
    return %c0_i32, %c0_i32_0 : i32, i32
  }
  func.func @transform_3(%arg0: i32) -> (i32, i32) {
    %c0_i32 = arith.constant 0 : i32
    %c0_i32_0 = arith.constant 0 : i32
    return %arg0, %c0_i32 : i32, i32
  }
}

</mosaic_0001>

<llo_original>
// kernel: noisy_embedding.2
$region0: #{noisy_embedding.2}
  #allocation0 [shape = 'u32[]', space=smem, size = 0x4, offset = 0x4, fixed_abs, tag = 'smem constant byte address 0x4 - core index']
  #allocation1 [shape = 'u32[144,128]{1,0:T(1,128)}', space=vmem, size = 0x12000, scoped, tag = 'internal scratch']
  %s0 = inlined_call_operand.vmem [shape: f32[128,32], index: 0, kind: input, shape index: {}]
  %s1 = inlined_call_operand.vmem [shape: f32[128,1], index: 1, kind: input, shape index: {}]
  %s2 = inlined_call_operand.vmem [shape: bf16[32,128], index: 2, kind: input, shape index: {}]
  %s3 = inlined_call_operand.vmem [shape: bf16[128,128], index: 3, kind: output, shape index: {}]
  %s4 = sld [smem:[#allocation0]]
  $region22: #{noisy_embedding.2} parent=0
    _
  %s6 = ssub.s32 1, %s4
  %s7 = scalar_select 0, %s6, %s4
  // Predicated region
  $region2: #{noisy_embedding.2} parent=0 // pred_check
    _
  $region3: #{noisy_embedding.2} parent=0 // pred_check_branch
    %9 = sbr.rel (0) target = $region5
  $region4: #{noisy_embedding.2} parent=0 // pred_region
    _
  $region5: #{noisy_embedding.2} parent=0 // pred_fallthru
    _
  // Predicated region
  $region6: #{noisy_embedding.2} parent=0 // pred_check
    _
  $region7: #{noisy_embedding.2} parent=0 // pred_check_branch
    %11 = sbr.rel (0) target = $region9
  $region8: #{noisy_embedding.2} parent=0 // pred_region
    _
  $region9: #{noisy_embedding.2} parent=0 // pred_fallthru
    _
  // Predicated region
  $region10: #{noisy_embedding.2} parent=0 // pred_check
    _
  $region11: #{noisy_embedding.2} parent=0 // pred_check_branch
    %13 = sbr.rel (0) target = $region13
  $region12: #{noisy_embedding.2} parent=0 // pred_region
    _
  $region13: #{noisy_embedding.2} parent=0 // pred_fallthru
    _
  %v15 = vld [vmem:[%s0] sm:$0xff]
  %v16 = vld [vmem:[%s0 + $0x8] sm:$0xff]
  %v17 = vld [vmem:[%s0 + $0x10] sm:$0xff]
  %v18 = vld [vmem:[%s0 + $0x18] sm:$0xff]
  %v19 = vld [vmem:[%s0 + $0x20] sm:$0xff]
  %v20 = vld [vmem:[%s0 + $0x28] sm:$0xff]
  %v21 = vld [vmem:[%s0 + $0x30] sm:$0xff]
  %v22 = vld [vmem:[%s0 + $0x38] sm:$0xff]
  %v23 = vld [vmem:[%s0 + $0x40] sm:$0xff]
  %v24 = vld [vmem:[%s0 + $0x48] sm:$0xff]
  %v25 = vld [vmem:[%s0 + $0x50] sm:$0xff]
  %v26 = vld [vmem:[%s0 + $0x58] sm:$0xff]
  %v27 = vld [vmem:[%s0 + $0x60] sm:$0xff]
  %v28 = vld [vmem:[%s0 + $0x68] sm:$0xff]
  %v29 = vld [vmem:[%s0 + $0x70] sm:$0xff]
  %v30 = vld [vmem:[%s0 + $0x78] sm:$0xff]
  %v31 = vmul.f32 %v15, %v15
  %v32 = vmul.f32 %v16, %v16
  %v33 = vmul.f32 %v17, %v17
  %v34 = vmul.f32 %v18, %v18
  %v35 = vmul.f32 %v19, %v19
  %v36 = vmul.f32 %v20, %v20
  %v37 = vmul.f32 %v21, %v21
  %v38 = vmul.f32 %v22, %v22
  %v39 = vmul.f32 %v23, %v23
  %v40 = vmul.f32 %v24, %v24
  %v41 = vmul.f32 %v25, %v25
  %v42 = vmul.f32 %v26, %v26
  %v43 = vmul.f32 %v27, %v27
  %v44 = vmul.f32 %v28, %v28
  %v45 = vmul.f32 %v29, %v29
  %v46 = vmul.f32 %v30, %v30
  %vm47 = vcmask 261120
  %v48 = vsel %vm47, %v31, 0.0
  %49 = vadd.xlane.f32.xlu0 %v48
  %v50 = vpop.xlane.xlu0 %49
  %v51 = vsel %vm47, %v32, 0.0
  %52 = vadd.xlane.f32.xlu0 %v51
  %v53 = vpop.xlane.xlu0 %52
  %v54 = vsel %vm47, %v33, 0.0
  %55 = vadd.xlane.f32.xlu0 %v54
  %v56 = vpop.xlane.xlu0 %55
  %v57 = vsel %vm47, %v34, 0.0
  %58 = vadd.xlane.f32.xlu0 %v57
  %v59 = vpop.xlane.xlu0 %58
  %v60 = vsel %vm47, %v35, 0.0
  %61 = vadd.xlane.f32.xlu0 %v60
  %v62 = vpop.xlane.xlu0 %61
  %v63 = vsel %vm47, %v36, 0.0
  %64 = vadd.xlane.f32.xlu0 %v63
  %v65 = vpop.xlane.xlu0 %64
  %v66 = vsel %vm47, %v37, 0.0
  %67 = vadd.xlane.f32.xlu0 %v66
  %v68 = vpop.xlane.xlu0 %67
  %v69 = vsel %vm47, %v38, 0.0
  %70 = vadd.xlane.f32.xlu0 %v69
  %v71 = vpop.xlane.xlu0 %70
  %v72 = vsel %vm47, %v39, 0.0
  %73 = vadd.xlane.f32.xlu0 %v72
  %v74 = vpop.xlane.xlu0 %73
  %v75 = vsel %vm47, %v40, 0.0
  %76 = vadd.xlane.f32.xlu0 %v75
  %v77 = vpop.xlane.xlu0 %76
  %v78 = vsel %vm47, %v41, 0.0
  %79 = vadd.xlane.f32.xlu0 %v78
  %v80 = vpop.xlane.xlu0 %79
  %v81 = vsel %vm47, %v42, 0.0
  %82 = vadd.xlane.f32.xlu0 %v81
  %v83 = vpop.xlane.xlu0 %82
  %v84 = vsel %vm47, %v43, 0.0
  %85 = vadd.xlane.f32.xlu0 %v84
  %v86 = vpop.xlane.xlu0 %85
  %v87 = vsel %vm47, %v44, 0.0
  %88 = vadd.xlane.f32.xlu0 %v87
  %v89 = vpop.xlane.xlu0 %88
  %v90 = vsel %vm47, %v45, 0.0
  %91 = vadd.xlane.f32.xlu0 %v90
  %v92 = vpop.xlane.xlu0 %91
  %v93 = vsel %vm47, %v46, 0.0
  %94 = vadd.xlane.f32.xlu0 %v93
  %v95 = vpop.xlane.xlu0 %94
  %v96 = vmax.f32 %v50, 1e-24
  %v97 = vmax.f32 %v53, 1e-24
  %v98 = vmax.f32 %v56, 1e-24
  %v99 = vmax.f32 %v59, 1e-24
  %v100 = vmax.f32 %v62, 1e-24
  %v101 = vmax.f32 %v65, 1e-24
  %v102 = vmax.f32 %v68, 1e-24
  %v103 = vmax.f32 %v71, 1e-24
  %v104 = vmax.f32 %v74, 1e-24
  %v105 = vmax.f32 %v77, 1e-24
  %v106 = vmax.f32 %v80, 1e-24
  %v107 = vmax.f32 %v83, 1e-24
  %v108 = vmax.f32 %v86, 1e-24
  %v109 = vmax.f32 %v89, 1e-24
  %v110 = vmax.f32 %v92, 1e-24
  %v111 = vmax.f32 %v95, 1e-24
  %v112 = vrsqrt.pop %v96
  %v113 = vrsqrt.pop %v97
  %v114 = vrsqrt.pop %v98
  %v115 = vrsqrt.pop %v99
  %v116 = vrsqrt.pop %v100
  %v117 = vrsqrt.pop %v101
  %v118 = vrsqrt.pop %v102
  %v119 = vrsqrt.pop %v103
  %v120 = vrsqrt.pop %v104
  %v121 = vrsqrt.pop %v105
  %v122 = vrsqrt.pop %v106
  %v123 = vrsqrt.pop %v107
  %v124 = vrsqrt.pop %v108
  %v125 = vrsqrt.pop %v109
  %v126 = vrsqrt.pop %v110
  %v127 = vrsqrt.pop %v111
  %v128 = vmul.f32 %v15, %v112
  %v129 = vmul.f32 %v16, %v113
  %v130 = vmul.f32 %v17, %v114
  %v131 = vmul.f32 %v18, %v115
  %v132 = vmul.f32 %v19, %v116
  %v133 = vmul.f32 %v20, %v117
  %v134 = vmul.f32 %v21, %v118
  %v135 = vmul.f32 %v22, %v119
  %v136 = vmul.f32 %v23, %v120
  %v137 = vmul.f32 %v24, %v121
  %v138 = vmul.f32 %v25, %v122
  %v139 = vmul.f32 %v26, %v123
  %v140 = vmul.f32 %v27, %v124
  %v141 = vmul.f32 %v28, %v125
  %v142 = vmul.f32 %v29, %v126
  %v143 = vmul.f32 %v30, %v127
  %v144 = vld [vmem:[%s1] sm:$0xff]
  %v145 = vld [vmem:[%s1 + $0x8] sm:$0xff]
  %v146 = vld [vmem:[%s1 + $0x10] sm:$0xff]
  %v147 = vld [vmem:[%s1 + $0x18] sm:$0xff]
  %v148 = vld [vmem:[%s1 + $0x20] sm:$0xff]
  %v149 = vld [vmem:[%s1 + $0x28] sm:$0xff]
  %v150 = vld [vmem:[%s1 + $0x30] sm:$0xff]
  %v151 = vld [vmem:[%s1 + $0x38] sm:$0xff]
  %v152 = vld [vmem:[%s1 + $0x40] sm:$0xff]
  %v153 = vld [vmem:[%s1 + $0x48] sm:$0xff]
  %v154 = vld [vmem:[%s1 + $0x50] sm:$0xff]
  %v155 = vld [vmem:[%s1 + $0x58] sm:$0xff]
  %v156 = vld [vmem:[%s1 + $0x60] sm:$0xff]
  %v157 = vld [vmem:[%s1 + $0x68] sm:$0xff]
  %v158 = vld [vmem:[%s1 + $0x70] sm:$0xff]
  %v159 = vld [vmem:[%s1 + $0x78] sm:$0xff]
  %161 = vset.pattern.permute.xlu0 0
  %162 = vperm.xlu0 %161, %v144
  %v163 = vpop.permute.xlu0 %162
  %166 = vset.pattern.permute.xlu0 0
  %167 = vperm.xlu0 %166, %v145
  %v168 = vpop.permute.xlu0 %167
  %171 = vset.pattern.permute.xlu0 0
  %172 = vperm.xlu0 %171, %v146
  %v173 = vpop.permute.xlu0 %172
  %176 = vset.pattern.permute.xlu0 0
  %177 = vperm.xlu0 %176, %v147
  %v178 = vpop.permute.xlu0 %177
  %181 = vset.pattern.permute.xlu0 0
  %182 = vperm.xlu0 %181, %v148
  %v183 = vpop.permute.xlu0 %182
  %186 = vset.pattern.permute.xlu0 0
  %187 = vperm.xlu0 %186, %v149
  %v188 = vpop.permute.xlu0 %187
  %191 = vset.pattern.permute.xlu0 0
  %192 = vperm.xlu0 %191, %v150
  %v193 = vpop.permute.xlu0 %192
  %196 = vset.pattern.permute.xlu0 0
  %197 = vperm.xlu0 %196, %v151
  %v198 = vpop.permute.xlu0 %197
  %201 = vset.pattern.permute.xlu0 0
  %202 = vperm.xlu0 %201, %v152
  %v203 = vpop.permute.xlu0 %202
  %206 = vset.pattern.permute.xlu0 0
  %207 = vperm.xlu0 %206, %v153
  %v208 = vpop.permute.xlu0 %207
  %211 = vset.pattern.permute.xlu0 0
  %212 = vperm.xlu0 %211, %v154
  %v213 = vpop.permute.xlu0 %212
  %216 = vset.pattern.permute.xlu0 0
  %217 = vperm.xlu0 %216, %v155
  %v218 = vpop.permute.xlu0 %217
  %221 = vset.pattern.permute.xlu0 0
  %222 = vperm.xlu0 %221, %v156
  %v223 = vpop.permute.xlu0 %222
  %226 = vset.pattern.permute.xlu0 0
  %227 = vperm.xlu0 %226, %v157
  %v228 = vpop.permute.xlu0 %227
  %231 = vset.pattern.permute.xlu0 0
  %232 = vperm.xlu0 %231, %v158
  %v233 = vpop.permute.xlu0 %232
  %236 = vset.pattern.permute.xlu0 0
  %237 = vperm.xlu0 %236, %v159
  %v238 = vpop.permute.xlu0 %237
  %v240 = vmul.f32 %v128, %v163
  %v241 = vmul.f32 %v129, %v168
  %v242 = vmul.f32 %v130, %v173
  %v243 = vmul.f32 %v131, %v178
  %v244 = vmul.f32 %v132, %v183
  %v245 = vmul.f32 %v133, %v188
  %v246 = vmul.f32 %v134, %v193
  %v247 = vmul.f32 %v135, %v198
  %v248 = vmul.f32 %v136, %v203
  %v249 = vmul.f32 %v137, %v208
  %v250 = vmul.f32 %v138, %v213
  %v251 = vmul.f32 %v139, %v218
  %v252 = vmul.f32 %v140, %v223
  %v253 = vmul.f32 %v141, %v228
  %v254 = vmul.f32 %v142, %v233
  %v255 = vmul.f32 %v143, %v238
  %v256 = vpack.c.bf16 %v241, %v240
  %v257 = vpack.c.bf16 %v243, %v242
  %v258 = vpack.c.bf16 %v245, %v244
  %v259 = vpack.c.bf16 %v247, %v246
  %v260 = vpack.c.bf16 %v249, %v248
  %v261 = vpack.c.bf16 %v251, %v250
  %v262 = vpack.c.bf16 %v253, %v252
  %v263 = vpack.c.bf16 %v255, %v254
  %v264 = vld [vmem:[%s2] sm:$0xf]
  %v265 = vld [vmem:[%s2 + $0x4] sm:$0xf]
  %v266 = vld [vmem:[%s2 + $0x8] sm:$0xf]
  %v267 = vld [vmem:[%s2 + $0xc] sm:$0xf]
  %v272 = vunpack.c.l.b16 %v264
  %v273 = vunpack.c.l.b16 %v265
  %v274 = vunpack.c.l.b16 %v266
  %v275 = vunpack.c.l.b16 %v267
  %v276 = vpack.c.b16 %v273, %v272
  %v277 = vpack.c.b16 %v275, %v274
  %v281 = vsel %vm47, %v256, 0
  %v284 = vsel %vm47, %v257, 0
  %v287 = vsel %vm47, %v258, 0
  %v290 = vsel %vm47, %v259, 0
  %v293 = vsel %vm47, %v260, 0
  %v296 = vsel %vm47, %v261, 0
  %v299 = vsel %vm47, %v262, 0
  %v302 = vsel %vm47, %v263, 0
  %304 = vmatprep.subr.bf16.mxu0 0
  %305 = vmatpush1.bf16.msra.mxu0 %v276
  %306 = vmatprep.subr.bf16.mxu0 0
  %307 = vmatpush1.bf16.msra.mxu0 %v277
  %308 = vmatprep.subr.bf16.mxu0 0
  %309 = vmatpush1.bf16.msra.mxu0 0
  %310 = vmatprep.subr.bf16.mxu0 0
  %311 = vmatpush1.bf16.msra.mxu0 0
  %312 = vmatprep.subr.bf16.mxu0 0
  %313 = vmatpush1.bf16.msra.mxu0 0
  %314 = vmatprep.subr.bf16.mxu0 0
  %315 = vmatpush1.bf16.msra.mxu0 0
  %316 = vmatprep.subr.bf16.mxu0 0
  %317 = vmatpush1.bf16.msra.mxu0 0
  %318 = vmatprep.subr.bf16.mxu0 0
  %319 = vmatpush1.bf16.msra.mxu0 0
  %320 = vmatprep.subr.bf16.mxu0 0
  %321 = vmatpush1.bf16.msra.mxu0 0
  %322 = vmatprep.subr.bf16.mxu0 0
  %323 = vmatpush1.bf16.msra.mxu0 0
  %324 = vmatprep.subr.bf16.mxu0 0
  %325 = vmatpush1.bf16.msra.mxu0 0
  %326 = vmatprep.subr.bf16.mxu0 0
  %327 = vmatpush1.bf16.msra.mxu0 0
  %328 = vmatprep.subr.bf16.mxu0 0
  %329 = vmatpush1.bf16.msra.mxu0 0
  %330 = vmatprep.subr.bf16.mxu0 0
  %331 = vmatpush1.bf16.msra.mxu0 0
  %332 = vmatprep.subr.bf16.mxu0 0
  %333 = vmatpush1.bf16.msra.mxu0 0
  %334 = vmatprep.subr.bf16.mxu0 0
  %335 = vmatpush1.bf16.msra.mxu0 0
  %336 = vmatprep.mubr.bf16.mxu0 0
  %337 = vmatmul.mubr.bf16.gmra.mrb[0].mxu0 %v281
  %v338 = vpop.f32.mrb[0].mxu0
  %v339 = vadd.f32 0.0, %v338
  %v340 = vpop.f32.mrb[0].mxu0
  %v341 = vpop.f32.mrb[0].mxu0
  %v342 = vadd.f32 0.0, %v341
  %v343 = vpop.f32.mrb[0].mxu0
  %344 = vmatprep.mubr.bf16.mxu0 0
  %345 = vmatmul.mubr.bf16.gmra.mrb[0].mxu0 %v284
  %v346 = vpop.f32.mrb[0].mxu0
  %v347 = vadd.f32 0.0, %v346
  %v348 = vpop.f32.mrb[0].mxu0
  %v349 = vpop.f32.mrb[0].mxu0
  %v350 = vadd.f32 0.0, %v349
  %v351 = vpop.f32.mrb[0].mxu0
  %352 = vmatprep.mubr.bf16.mxu0 0
  %353 = vmatmul.mubr.bf16.gmra.mrb[0].mxu0 %v287
  %v354 = vpop.f32.mrb[0].mxu0
  %v355 = vadd.f32 0.0, %v354
  %v356 = vpop.f32.mrb[0].mxu0
  %v357 = vpop.f32.mrb[0].mxu0
  %v358 = vadd.f32 0.0, %v357
  %v359 = vpop.f32.mrb[0].mxu0
  %360 = vmatprep.mubr.bf16.mxu0 0
  %361 = vmatmul.mubr.bf16.gmra.mrb[0].mxu0 %v290
  %v362 = vpop.f32.mrb[0].mxu0
  %v363 = vadd.f32 0.0, %v362
  %v364 = vpop.f32.mrb[0].mxu0
  %v365 = vpop.f32.mrb[0].mxu0
  %v366 = vadd.f32 0.0, %v365
  %v367 = vpop.f32.mrb[0].mxu0
  %368 = vmatprep.mubr.bf16.mxu0 0
  %369 = vmatmul.mubr.bf16.gmra.mrb[0].mxu0 %v293
  %v370 = vpop.f32.mrb[0].mxu0
  %v371 = vadd.f32 0.0, %v370
  %v372 = vpop.f32.mrb[0].mxu0
  %v373 = vpop.f32.mrb[0].mxu0
  %v374 = vadd.f32 0.0, %v373
  %v375 = vpop.f32.mrb[0].mxu0
  %376 = vmatprep.mubr.bf16.mxu0 0
  %377 = vmatmul.mubr.bf16.gmra.mrb[0].mxu0 %v296
  %v378 = vpop.f32.mrb[0].mxu0
  %v379 = vadd.f32 0.0, %v378
  %v380 = vpop.f32.mrb[0].mxu0
  %v381 = vpop.f32.mrb[0].mxu0
  %v382 = vadd.f32 0.0, %v381
  %v383 = vpop.f32.mrb[0].mxu0
  %384 = vmatprep.mubr.bf16.mxu0 0
  %385 = vmatmul.mubr.bf16.gmra.mrb[0].mxu0 %v299
  %v386 = vpop.f32.mrb[0].mxu0
  %v387 = vadd.f32 0.0, %v386
  %v388 = vpop.f32.mrb[0].mxu0
  %v389 = vpop.f32.mrb[0].mxu0
  %v390 = vadd.f32 0.0, %v389
  %v391 = vpop.f32.mrb[0].mxu0
  %392 = vmatprep.mubr.bf16.mxu0 0
  %393 = vmatmul.mubr.bf16.gmra.mrb[0].mxu0 %v302
  %v394 = vpop.f32.mrb[0].mxu0
  %v395 = vadd.f32 0.0, %v394
  %v396 = vpop.f32.mrb[0].mxu0
  %v397 = vpop.f32.mrb[0].mxu0
  %v398 = vadd.f32 0.0, %v397
  %v399 = vpop.f32.mrb[0].mxu0
  %400 = vdwg.mxu0
  %v401 = vpack.c.bf16 %v342, %v339
  %v402 = vpack.c.bf16 %v350, %v347
  %v403 = vpack.c.bf16 %v358, %v355
  %v404 = vpack.c.bf16 %v366, %v363
  %v405 = vpack.c.bf16 %v374, %v371
  %v406 = vpack.c.bf16 %v382, %v379
  %v407 = vpack.c.bf16 %v390, %v387
  %v408 = vpack.c.bf16 %v398, %v395
  %v417 = vunpack.c.l.b16 %v401
  %v418 = vunpack.c.h.b16 %v401
  %v419 = vunpack.c.l.b16 %v402
  %v420 = vunpack.c.h.b16 %v402
  %v421 = vunpack.c.l.b16 %v403
  %v422 = vunpack.c.h.b16 %v403
  %v423 = vunpack.c.l.b16 %v404
  %v424 = vunpack.c.h.b16 %v404
  %v425 = vunpack.c.l.b16 %v405
  %v426 = vunpack.c.h.b16 %v405
  %v427 = vunpack.c.l.b16 %v406
  %v428 = vunpack.c.h.b16 %v406
  %v429 = vunpack.c.l.b16 %v407
  %v430 = vunpack.c.h.b16 %v407
  %v431 = vunpack.c.l.b16 %v408
  %v432 = vunpack.c.h.b16 %v408
  %v433 = vpack.c.b16 %v417, %v417
  %v434 = vpack.c.b16 %v418, %v418
  %v435 = vpack.c.b16 %v419, %v419
  %v436 = vpack.c.b16 %v420, %v420
  %v437 = vpack.c.b16 %v421, %v421
  %v438 = vpack.c.b16 %v422, %v422
  %v439 = vpack.c.b16 %v423, %v423
  %v440 = vpack.c.b16 %v424, %v424
  %v441 = vpack.c.b16 %v425, %v425
  %v442 = vpack.c.b16 %v426, %v426
  %v443 = vpack.c.b16 %v427, %v427
  %v444 = vpack.c.b16 %v428, %v428
  %v445 = vpack.c.b16 %v429, %v429
  %v446 = vpack.c.b16 %v430, %v430
  %v447 = vpack.c.b16 %v431, %v431
  %v448 = vpack.c.b16 %v432, %v432
  %465 = vst [vmem:[%s3] sm:$0xf] %v433
  %466 = vst [vmem:[%s3 + $0x4] sm:$0xf] %v434
  %467 = vst [vmem:[%s3 + $0x8] sm:$0xf] %v435
  %468 = vst [vmem:[%s3 + $0xc] sm:$0xf] %v436
  %469 = vst [vmem:[%s3 + $0x10] sm:$0xf] %v437
  %470 = vst [vmem:[%s3 + $0x14] sm:$0xf] %v438
  %471 = vst [vmem:[%s3 + $0x18] sm:$0xf] %v439
  %472 = vst [vmem:[%s3 + $0x1c] sm:$0xf] %v440
  %473 = vst [vmem:[%s3 + $0x20] sm:$0xf] %v441
  %474 = vst [vmem:[%s3 + $0x24] sm:$0xf] %v442
  %475 = vst [vmem:[%s3 + $0x28] sm:$0xf] %v443
  %476 = vst [vmem:[%s3 + $0x2c] sm:$0xf] %v444
  %477 = vst [vmem:[%s3 + $0x30] sm:$0xf] %v445
  %478 = vst [vmem:[%s3 + $0x34] sm:$0xf] %v446
  %479 = vst [vmem:[%s3 + $0x38] sm:$0xf] %v447
  %480 = vst [vmem:[%s3 + $0x3c] sm:$0xf] %v448
  // Predicated region
  $region14: #{noisy_embedding.2} parent=0 // pred_check
    _
  $region15: #{noisy_embedding.2} parent=0 // pred_check_branch
    %482 = sbr.rel (0) target = $region17
  $region16: #{noisy_embedding.2} parent=0 // pred_region
    _
  $region17: #{noisy_embedding.2} parent=0 // pred_fallthru
    _
  // Predicated region
  $region18: #{noisy_embedding.2} parent=0 // pred_check
    _
  $region19: #{noisy_embedding.2} parent=0 // pred_check_branch
    %484 = sbr.rel (0) target = $region21
  $region20: #{noisy_embedding.2} parent=0 // pred_region
    _
  $region21: #{noisy_embedding.2} parent=0 // pred_fallthru
    _

// kernel: noisy_embedding.3
$region0: #{noisy_embedding.3}
  #allocation0 [shape = 'u32[]', space=smem, size = 0x4, offset = 0x4, fixed_abs, tag = 'smem constant byte address 0x4 - core index']
  #allocation1 [shape = 'u32[144,128]{1,0:T(1,128)}', space=vmem, size = 0x12000, scoped, tag = 'internal scratch']
  #allocation2 [shape = 'f32[128,128]{1,0:T(8,128)}', space=vmem, size = 0x10000, scoped, tag = 'scratch operand']
  %s0 = inlined_call_operand.vmem [shape: s8[128,128], index: 0, kind: input, shape index: {}]
  %s1 = inlined_call_operand.vmem [shape: bf16[128,128], index: 1, kind: input, shape index: {}]
  %s2 = inlined_call_operand.vmem [shape: f32[128,1], index: 2, kind: input, shape index: {}]
  %s3 = inlined_call_operand.vmem [shape: f32[1,128], index: 3, kind: input, shape index: {}]
  %s4 = inlined_call_operand.vmem [shape: f32[128,128], index: 4, kind: output, shape index: {}]
  %s5 = sld [smem:[#allocation0]]
  $region34: #{noisy_embedding.3} parent=0
    _
  %s7 = ssub.s32 1, %s5
  %s8 = scalar_select 0, %s7, %s5
  // Predicated region
  $region2: #{noisy_embedding.3} parent=0 // pred_check
    _
  $region3: #{noisy_embedding.3} parent=0 // pred_check_branch
    %10 = sbr.rel (0) target = $region5
  $region4: #{noisy_embedding.3} parent=0 // pred_region
    _
  $region5: #{noisy_embedding.3} parent=0 // pred_fallthru
    _
  // Predicated region
  $region6: #{noisy_embedding.3} parent=0 // pred_check
    _
  $region7: #{noisy_embedding.3} parent=0 // pred_check_branch
    %12 = sbr.rel (0) target = $region9
  $region8: #{noisy_embedding.3} parent=0 // pred_region
    _
  $region9: #{noisy_embedding.3} parent=0 // pred_fallthru
    _
  // Predicated region
  $region10: #{noisy_embedding.3} parent=0 // pred_check
    _
  $region11: #{noisy_embedding.3} parent=0 // pred_check_branch
    %14 = sbr.rel (0) target = $region13
  $region12: #{noisy_embedding.3} parent=0 // pred_region
    _
  $region13: #{noisy_embedding.3} parent=0 // pred_fallthru
    _
  // Predicated region
  $region14: #{noisy_embedding.3} parent=0 // pred_check
    _
  $region15: #{noisy_embedding.3} parent=0 // pred_check_branch
    %16 = sbr.rel (0) target = $region17
  $region16: #{noisy_embedding.3} parent=0 // pred_region
    _
  $region17: #{noisy_embedding.3} parent=0 // pred_fallthru
    _
  %p18 = scmp.eq.s32.totalorder 0, 0
  // Predicated region
  $region18: #{noisy_embedding.3} parent=0 // pred_check
    %p19 = pneg %p18
  $region19: #{noisy_embedding.3} parent=0 // pred_check_branch
    %21 = sbr.rel (%p19) target = $region21
  $region20: #{noisy_embedding.3} parent=0 // pred_region
    %22 = vst [vmem:[#allocation2] sm:$0xff] 0.0
    %23 = vst [vmem:[#allocation2 + $0x8] sm:$0xff] 0.0
    %24 = vst [vmem:[#allocation2 + $0x10] sm:$0xff] 0.0
    %25 = vst [vmem:[#allocation2 + $0x18] sm:$0xff] 0.0
    %26 = vst [vmem:[#allocation2 + $0x20] sm:$0xff] 0.0
    %27 = vst [vmem:[#allocation2 + $0x28] sm:$0xff] 0.0
    %28 = vst [vmem:[#allocation2 + $0x30] sm:$0xff] 0.0
    %29 = vst [vmem:[#allocation2 + $0x38] sm:$0xff] 0.0
    %30 = vst [vmem:[#allocation2 + $0x40] sm:$0xff] 0.0
    %31 = vst [vmem:[#allocation2 + $0x48] sm:$0xff] 0.0
    %32 = vst [vmem:[#allocation2 + $0x50] sm:$0xff] 0.0
    %33 = vst [vmem:[#allocation2 + $0x58] sm:$0xff] 0.0
    %34 = vst [vmem:[#allocation2 + $0x60] sm:$0xff] 0.0
    %35 = vst [vmem:[#allocation2 + $0x68] sm:$0xff] 0.0
    %36 = vst [vmem:[#allocation2 + $0x70] sm:$0xff] 0.0
    %37 = vst [vmem:[#allocation2 + $0x78] sm:$0xff] 0.0
  $region21: #{noisy_embedding.3} parent=0 // pred_fallthru
    _
  %v38 = vld [vmem:[%s0] sm:$0x3]
  %v39 = vld [vmem:[%s0 + $0x2] sm:$0x3]
  %v40 = vld [vmem:[%s0 + $0x4] sm:$0x3]
  %v41 = vld [vmem:[%s0 + $0x6] sm:$0x3]
  %v42 = vld [vmem:[%s0 + $0x8] sm:$0x3]
  %v43 = vld [vmem:[%s0 + $0xa] sm:$0x3]
  %v44 = vld [vmem:[%s0 + $0xc] sm:$0x3]
  %v45 = vld [vmem:[%s0 + $0xe] sm:$0x3]
  %v46 = vld [vmem:[%s0 + $0x10] sm:$0x3]
  %v47 = vld [vmem:[%s0 + $0x12] sm:$0x3]
  %v48 = vld [vmem:[%s0 + $0x14] sm:$0x3]
  %v49 = vld [vmem:[%s0 + $0x16] sm:$0x3]
  %v50 = vld [vmem:[%s0 + $0x18] sm:$0x3]
  %v51 = vld [vmem:[%s0 + $0x1a] sm:$0x3]
  %v52 = vld [vmem:[%s0 + $0x1c] sm:$0x3]
  %v53 = vld [vmem:[%s0 + $0x1e] sm:$0x3]
  %v54 = vunpack.c.l.s8.bf16 %v38
  %v55 = vunpack.c.l.s8.bf16 %v39
  %v56 = vunpack.c.l.s8.bf16 %v40
  %v57 = vunpack.c.l.s8.bf16 %v41
  %v58 = vunpack.c.l.s8.bf16 %v42
  %v59 = vunpack.c.l.s8.bf16 %v43
  %v60 = vunpack.c.l.s8.bf16 %v44
  %v61 = vunpack.c.l.s8.bf16 %v45
  %v62 = vunpack.c.l.s8.bf16 %v46
  %v63 = vunpack.c.l.s8.bf16 %v47
  %v64 = vunpack.c.l.s8.bf16 %v48
  %v65 = vunpack.c.l.s8.bf16 %v49
  %v66 = vunpack.c.l.s8.bf16 %v50
  %v67 = vunpack.c.l.s8.bf16 %v51
  %v68 = vunpack.c.l.s8.bf16 %v52
  %v69 = vunpack.c.l.s8.bf16 %v53
  %v70 = vld [vmem:[#allocation2] sm:$0xff]
  %v71 = vld [vmem:[#allocation2 + $0x8] sm:$0xff]
  %v72 = vld [vmem:[#allocation2 + $0x10] sm:$0xff]
  %v73 = vld [vmem:[#allocation2 + $0x18] sm:$0xff]
  %v74 = vld [vmem:[#allocation2 + $0x20] sm:$0xff]
  %v75 = vld [vmem:[#allocation2 + $0x28] sm:$0xff]
  %v76 = vld [vmem:[#allocation2 + $0x30] sm:$0xff]
  %v77 = vld [vmem:[#allocation2 + $0x38] sm:$0xff]
  %v78 = vld [vmem:[#allocation2 + $0x40] sm:$0xff]
  %v79 = vld [vmem:[#allocation2 + $0x48] sm:$0xff]
  %v80 = vld [vmem:[#allocation2 + $0x50] sm:$0xff]
  %v81 = vld [vmem:[#allocation2 + $0x58] sm:$0xff]
  %v82 = vld [vmem:[#allocation2 + $0x60] sm:$0xff]
  %v83 = vld [vmem:[#allocation2 + $0x68] sm:$0xff]
  %v84 = vld [vmem:[#allocation2 + $0x70] sm:$0xff]
  %v85 = vld [vmem:[#allocation2 + $0x78] sm:$0xff]
  %v86 = vld [vmem:[%s1] sm:$0xf]
  %v87 = vld [vmem:[%s1 + $0x4] sm:$0xf]
  %v88 = vld [vmem:[%s1 + $0x8] sm:$0xf]
  %v89 = vld [vmem:[%s1 + $0xc] sm:$0xf]
  %v90 = vld [vmem:[%s1 + $0x10] sm:$0xf]
  %v91 = vld [vmem:[%s1 + $0x14] sm:$0xf]
  %v92 = vld [vmem:[%s1 + $0x18] sm:$0xf]
  %v93 = vld [vmem:[%s1 + $0x1c] sm:$0xf]
  %v94 = vld [vmem:[%s1 + $0x20] sm:$0xf]
  %v95 = vld [vmem:[%s1 + $0x24] sm:$0xf]
  %v96 = vld [vmem:[%s1 + $0x28] sm:$0xf]
  %v97 = vld [vmem:[%s1 + $0x2c] sm:$0xf]
  %v98 = vld [vmem:[%s1 + $0x30] sm:$0xf]
  %v99 = vld [vmem:[%s1 + $0x34] sm:$0xf]
  %v100 = vld [vmem:[%s1 + $0x38] sm:$0xf]
  %v101 = vld [vmem:[%s1 + $0x3c] sm:$0xf]
  %v118 = vunpack.c.l.b16 %v54
  %v119 = vunpack.c.l.b16 %v55
  %v120 = vunpack.c.l.b16 %v56
  %v121 = vunpack.c.l.b16 %v57
  %v122 = vunpack.c.l.b16 %v58
  %v123 = vunpack.c.l.b16 %v59
  %v124 = vunpack.c.l.b16 %v60
  %v125 = vunpack.c.l.b16 %v61
  %v126 = vunpack.c.l.b16 %v62
  %v127 = vunpack.c.l.b16 %v63
  %v128 = vunpack.c.l.b16 %v64
  %v129 = vunpack.c.l.b16 %v65
  %v130 = vunpack.c.l.b16 %v66
  %v131 = vunpack.c.l.b16 %v67
  %v132 = vunpack.c.l.b16 %v68
  %v133 = vunpack.c.l.b16 %v69
  %v134 = vpack.c.b16 %v119, %v118
  %v135 = vpack.c.b16 %v121, %v120
  %v136 = vpack.c.b16 %v123, %v122
  %v137 = vpack.c.b16 %v125, %v124
  %v138 = vpack.c.b16 %v127, %v126
  %v139 = vpack.c.b16 %v129, %v128
  %v140 = vpack.c.b16 %v131, %v130
  %v141 = vpack.c.b16 %v133, %v132
  %v166 = vunpack.c.l.b16 %v86
  %v167 = vunpack.c.l.b16 %v87
  %v168 = vunpack.c.l.b16 %v88
  %v169 = vunpack.c.l.b16 %v89
  %v170 = vunpack.c.l.b16 %v90
  %v171 = vunpack.c.l.b16 %v91
  %v172 = vunpack.c.l.b16 %v92
  %v173 = vunpack.c.l.b16 %v93
  %v174 = vunpack.c.l.b16 %v94
  %v175 = vunpack.c.l.b16 %v95
  %v176 = vunpack.c.l.b16 %v96
  %v177 = vunpack.c.l.b16 %v97
  %v178 = vunpack.c.l.b16 %v98
  %v179 = vunpack.c.l.b16 %v99
  %v180 = vunpack.c.l.b16 %v100
  %v181 = vunpack.c.l.b16 %v101
  %v182 = vpack.c.b16 %v167, %v166
  %v183 = vpack.c.b16 %v169, %v168
  %v184 = vpack.c.b16 %v171, %v170
  %v185 = vpack.c.b16 %v173, %v172
  %v186 = vpack.c.b16 %v175, %v174
  %v187 = vpack.c.b16 %v177, %v176
  %v188 = vpack.c.b16 %v179, %v178
  %v189 = vpack.c.b16 %v181, %v180
  %198 = vmatprep.subr.bf16.mxu0 0
  %199 = vmatpush1.bf16.msra.mxu0 %v182
  %200 = vmatprep.subr.bf16.mxu0 0
  %201 = vmatpush1.bf16.msra.mxu0 %v183
  %202 = vmatprep.subr.bf16.mxu0 0
  %203 = vmatpush1.bf16.msra.mxu0 %v184
  %204 = vmatprep.subr.bf16.mxu0 0
  %205 = vmatpush1.bf16.msra.mxu0 %v185
  %206 = vmatprep.subr.bf16.mxu0 0
  %207 = vmatpush1.bf16.msra.mxu0 %v186
  %208 = vmatprep.subr.bf16.mxu0 0
  %209 = vmatpush1.bf16.msra.mxu0 %v187
  %210 = vmatprep.subr.bf16.mxu0 0
  %211 = vmatpush1.bf16.msra.mxu0 %v188
  %212 = vmatprep.subr.bf16.mxu0 0
  %213 = vmatpush1.bf16.msra.mxu0 %v189
  %214 = vmatprep.subr.bf16.mxu0 0
  %215 = vmatpush1.bf16.msra.mxu0 0
  %216 = vmatprep.subr.bf16.mxu0 0
  %217 = vmatpush1.bf16.msra.mxu0 0
  %218 = vmatprep.subr.bf16.mxu0 0
  %219 = vmatpush1.bf16.msra.mxu0 0
  %220 = vmatprep.subr.bf16.mxu0 0
  %221 = vmatpush1.bf16.msra.mxu0 0
  %222 = vmatprep.subr.bf16.mxu0 0
  %223 = vmatpush1.bf16.msra.mxu0 0
  %224 = vmatprep.subr.bf16.mxu0 0
  %225 = vmatpush1.bf16.msra.mxu0 0
  %226 = vmatprep.subr.bf16.mxu0 0
  %227 = vmatpush1.bf16.msra.mxu0 0
  %228 = vmatprep.subr.bf16.mxu0 0
  %229 = vmatpush1.bf16.msra.mxu0 0
  %230 = vmatprep.mubr.bf16.mxu0 0
  %231 = vmatmul.mubr.bf16.gmra.mrb[0].mxu0 %v134
  %v232 = vpop.f32.mrb[0].mxu0
  %v233 = vadd.f32 0.0, %v232
  %v234 = vpop.f32.mrb[0].mxu0
  %v235 = vpop.f32.mrb[0].mxu0
  %v236 = vadd.f32 0.0, %v235
  %v237 = vpop.f32.mrb[0].mxu0
  %238 = vmatprep.mubr.bf16.mxu0 0
  %239 = vmatmul.mubr.bf16.gmra.mrb[0].mxu0 %v135
  %v240 = vpop.f32.mrb[0].mxu0
  %v241 = vadd.f32 0.0, %v240
  %v242 = vpop.f32.mrb[0].mxu0
  %v243 = vpop.f32.mrb[0].mxu0
  %v244 = vadd.f32 0.0, %v243
  %v245 = vpop.f32.mrb[0].mxu0
  %246 = vmatprep.mubr.bf16.mxu0 0
  %247 = vmatmul.mubr.bf16.gmra.mrb[0].mxu0 %v136
  %v248 = vpop.f32.mrb[0].mxu0
  %v249 = vadd.f32 0.0, %v248
  %v250 = vpop.f32.mrb[0].mxu0
  %v251 = vpop.f32.mrb[0].mxu0
  %v252 = vadd.f32 0.0, %v251
  %v253 = vpop.f32.mrb[0].mxu0
  %254 = vmatprep.mubr.bf16.mxu0 0
  %255 = vmatmul.mubr.bf16.gmra.mrb[0].mxu0 %v137
  %v256 = vpop.f32.mrb[0].mxu0
  %v257 = vadd.f32 0.0, %v256
  %v258 = vpop.f32.mrb[0].mxu0
  %v259 = vpop.f32.mrb[0].mxu0
  %v260 = vadd.f32 0.0, %v259
  %v261 = vpop.f32.mrb[0].mxu0
  %262 = vmatprep.mubr.bf16.mxu0 0
  %263 = vmatmul.mubr.bf16.gmra.mrb[0].mxu0 %v138
  %v264 = vpop.f32.mrb[0].mxu0
  %v265 = vadd.f32 0.0, %v264
  %v266 = vpop.f32.mrb[0].mxu0
  %v267 = vpop.f32.mrb[0].mxu0
  %v268 = vadd.f32 0.0, %v267
  %v269 = vpop.f32.mrb[0].mxu0
  %270 = vmatprep.mubr.bf16.mxu0 0
  %271 = vmatmul.mubr.bf16.gmra.mrb[0].mxu0 %v139
  %v272 = vpop.f32.mrb[0].mxu0
  %v273 = vadd.f32 0.0, %v272
  %v274 = vpop.f32.mrb[0].mxu0
  %v275 = vpop.f32.mrb[0].mxu0
  %v276 = vadd.f32 0.0, %v275
  %v277 = vpop.f32.mrb[0].mxu0
  %278 = vmatprep.mubr.bf16.mxu0 0
  %279 = vmatmul.mubr.bf16.gmra.mrb[0].mxu0 %v140
  %v280 = vpop.f32.mrb[0].mxu0
  %v281 = vadd.f32 0.0, %v280
  %v282 = vpop.f32.mrb[0].mxu0
  %v283 = vpop.f32.mrb[0].mxu0
  %v284 = vadd.f32 0.0, %v283
  %v285 = vpop.f32.mrb[0].mxu0
  %286 = vmatprep.mubr.bf16.mxu0 0
  %287 = vmatmul.mubr.bf16.gmra.mrb[0].mxu0 %v141
  %v288 = vpop.f32.mrb[0].mxu0
  %v289 = vadd.f32 0.0, %v288
  %v290 = vpop.f32.mrb[0].mxu0
  %v291 = vpop.f32.mrb[0].mxu0
  %v292 = vadd.f32 0.0, %v291
  %v293 = vpop.f32.mrb[0].mxu0
  %294 = vdwg.mxu0
  %v295 = vadd.f32 %v70, %v233
  %v296 = vadd.f32 %v71, %v236
  %v297 = vadd.f32 %v72, %v241
  %v298 = vadd.f32 %v73, %v244
  %v299 = vadd.f32 %v74, %v249
  %v300 = vadd.f32 %v75, %v252
  %v301 = vadd.f32 %v76, %v257
  %v302 = vadd.f32 %v77, %v260
  %v303 = vadd.f32 %v78, %v265
  %v304 = vadd.f32 %v79, %v268
  %v305 = vadd.f32 %v80, %v273
  %v306 = vadd.f32 %v81, %v276
  %v307 = vadd.f32 %v82, %v281
  %v308 = vadd.f32 %v83, %v284
  %v309 = vadd.f32 %v84, %v289
  %v310 = vadd.f32 %v85, %v292
  %311 = vst [vmem:[#allocation2] sm:$0xff] %v295
  %312 = vst [vmem:[#allocation2 + $0x8] sm:$0xff] %v296
  %313 = vst [vmem:[#allocation2 + $0x10] sm:$0xff] %v297
  %314 = vst [vmem:[#allocation2 + $0x18] sm:$0xff] %v298
  %315 = vst [vmem:[#allocation2 + $0x20] sm:$0xff] %v299
  %316 = vst [vmem:[#allocation2 + $0x28] sm:$0xff] %v300
  %317 = vst [vmem:[#allocation2 + $0x30] sm:$0xff] %v301
  %318 = vst [vmem:[#allocation2 + $0x38] sm:$0xff] %v302
  %319 = vst [vmem:[#allocation2 + $0x40] sm:$0xff] %v303
  %320 = vst [vmem:[#allocation2 + $0x48] sm:$0xff] %v304
  %321 = vst [vmem:[#allocation2 + $0x50] sm:$0xff] %v305
  %322 = vst [vmem:[#allocation2 + $0x58] sm:$0xff] %v306
  %323 = vst [vmem:[#allocation2 + $0x60] sm:$0xff] %v307
  %324 = vst [vmem:[#allocation2 + $0x68] sm:$0xff] %v308
  %325 = vst [vmem:[#allocation2 + $0x70] sm:$0xff] %v309
  %326 = vst [vmem:[#allocation2 + $0x78] sm:$0xff] %v310
  // Predicated region
  $region22: #{noisy_embedding.3} parent=0 // pred_check
    %p327 = pneg %p18
  $region23: #{noisy_embedding.3} parent=0 // pred_check_branch
    %329 = sbr.rel (%p327) target = $region25
  $region24: #{noisy_embedding.3} parent=0 // pred_region
    %v330 = vld [vmem:[%s2] sm:$0xff]
    %v331 = vld [vmem:[%s2 + $0x8] sm:$0xff]
    %v332 = vld [vmem:[%s2 + $0x10] sm:$0xff]
    %v333 = vld [vmem:[%s2 + $0x18] sm:$0xff]
    %v334 = vld [vmem:[%s2 + $0x20] sm:$0xff]
    %v335 = vld [vmem:[%s2 + $0x28] sm:$0xff]
    %v336 = vld [vmem:[%s2 + $0x30] sm:$0xff]
    %v337 = vld [vmem:[%s2 + $0x38] sm:$0xff]
    %v338 = vld [vmem:[%s2 + $0x40] sm:$0xff]
    %v339 = vld [vmem:[%s2 + $0x48] sm:$0xff]
    %v340 = vld [vmem:[%s2 + $0x50] sm:$0xff]
    %v341 = vld [vmem:[%s2 + $0x58] sm:$0xff]
    %v342 = vld [vmem:[%s2 + $0x60] sm:$0xff]
    %v343 = vld [vmem:[%s2 + $0x68] sm:$0xff]
    %v344 = vld [vmem:[%s2 + $0x70] sm:$0xff]
    %v345 = vld [vmem:[%s2 + $0x78] sm:$0xff]
    %v346 = vld [vmem:[#allocation2] sm:$0xff]
    %v347 = vld [vmem:[#allocation2 + $0x8] sm:$0xff]
    %v348 = vld [vmem:[#allocation2 + $0x10] sm:$0xff]
    %v349 = vld [vmem:[#allocation2 + $0x18] sm:$0xff]
    %v350 = vld [vmem:[#allocation2 + $0x20] sm:$0xff]
    %v351 = vld [vmem:[#allocation2 + $0x28] sm:$0xff]
    %v352 = vld [vmem:[#allocation2 + $0x30] sm:$0xff]
    %v353 = vld [vmem:[#allocation2 + $0x38] sm:$0xff]
    %v354 = vld [vmem:[#allocation2 + $0x40] sm:$0xff]
    %v355 = vld [vmem:[#allocation2 + $0x48] sm:$0xff]
    %v356 = vld [vmem:[#allocation2 + $0x50] sm:$0xff]
    %v357 = vld [vmem:[#allocation2 + $0x58] sm:$0xff]
    %v358 = vld [vmem:[#allocation2 + $0x60] sm:$0xff]
    %v359 = vld [vmem:[#allocation2 + $0x68] sm:$0xff]
    %v360 = vld [vmem:[#allocation2 + $0x70] sm:$0xff]
    %v361 = vld [vmem:[#allocation2 + $0x78] sm:$0xff]
    %363 = vset.pattern.permute.xlu0 0
    %364 = vperm.xlu0 %363, %v330
    %v365 = vpop.permute.xlu0 %364
    %368 = vset.pattern.permute.xlu0 0
    %369 = vperm.xlu0 %368, %v331
    %v370 = vpop.permute.xlu0 %369
    %373 = vset.pattern.permute.xlu0 0
    %374 = vperm.xlu0 %373, %v332
    %v375 = vpop.permute.xlu0 %374
    %378 = vset.pattern.permute.xlu0 0
    %379 = vperm.xlu0 %378, %v333
    %v380 = vpop.permute.xlu0 %379
    %383 = vset.pattern.permute.xlu0 0
    %384 = vperm.xlu0 %383, %v334
    %v385 = vpop.permute.xlu0 %384
    %388 = vset.pattern.permute.xlu0 0
    %389 = vperm.xlu0 %388, %v335
    %v390 = vpop.permute.xlu0 %389
    %393 = vset.pattern.permute.xlu0 0
    %394 = vperm.xlu0 %393, %v336
    %v395 = vpop.permute.xlu0 %394
    %398 = vset.pattern.permute.xlu0 0
    %399 = vperm.xlu0 %398, %v337
    %v400 = vpop.permute.xlu0 %399
    %403 = vset.pattern.permute.xlu0 0
    %404 = vperm.xlu0 %403, %v338
    %v405 = vpop.permute.xlu0 %404
    %408 = vset.pattern.permute.xlu0 0
    %409 = vperm.xlu0 %408, %v339
    %v410 = vpop.permute.xlu0 %409
    %413 = vset.pattern.permute.xlu0 0
    %414 = vperm.xlu0 %413, %v340
    %v415 = vpop.permute.xlu0 %414
    %418 = vset.pattern.permute.xlu0 0
    %419 = vperm.xlu0 %418, %v341
    %v420 = vpop.permute.xlu0 %419
    %423 = vset.pattern.permute.xlu0 0
    %424 = vperm.xlu0 %423, %v342
    %v425 = vpop.permute.xlu0 %424
    %428 = vset.pattern.permute.xlu0 0
    %429 = vperm.xlu0 %428, %v343
    %v430 = vpop.permute.xlu0 %429
    %433 = vset.pattern.permute.xlu0 0
    %434 = vperm.xlu0 %433, %v344
    %v435 = vpop.permute.xlu0 %434
    %438 = vset.pattern.permute.xlu0 0
    %439 = vperm.xlu0 %438, %v345
    %v440 = vpop.permute.xlu0 %439
    %v442 = vmul.f32 %v365, %v346
    %v443 = vmul.f32 %v370, %v347
    %v444 = vmul.f32 %v375, %v348
    %v445 = vmul.f32 %v380, %v349
    %v446 = vmul.f32 %v385, %v350
    %v447 = vmul.f32 %v390, %v351
    %v448 = vmul.f32 %v395, %v352
    %v449 = vmul.f32 %v400, %v353
    %v450 = vmul.f32 %v405, %v354
    %v451 = vmul.f32 %v410, %v355
    %v452 = vmul.f32 %v415, %v356
    %v453 = vmul.f32 %v420, %v357
    %v454 = vmul.f32 %v425, %v358
    %v455 = vmul.f32 %v430, %v359
    %v456 = vmul.f32 %v435, %v360
    %v457 = vmul.f32 %v440, %v361
    %v458 = vld [vmem:[%s3] sm:$0x1]
    %v460 = vlaneseq
    %v461 = vshrl.u32 %v460, 7
    %v462 = vsub.s32 0, %v461
    %v463 = vrot.slane %v458, %v462
    %v465 = vadd.f32 %v442, %v463
    %v466 = vadd.f32 %v443, %v463
    %v467 = vadd.f32 %v444, %v463
    %v468 = vadd.f32 %v445, %v463
    %v469 = vadd.f32 %v446, %v463
    %v470 = vadd.f32 %v447, %v463
    %v471 = vadd.f32 %v448, %v463
    %v472 = vadd.f32 %v449, %v463
    %v473 = vadd.f32 %v450, %v463
    %v474 = vadd.f32 %v451, %v463
    %v475 = vadd.f32 %v452, %v463
    %v476 = vadd.f32 %v453, %v463
    %v477 = vadd.f32 %v454, %v463
    %v478 = vadd.f32 %v455, %v463
    %v479 = vadd.f32 %v456, %v463
    %v480 = vadd.f32 %v457, %v463
    %481 = vst [vmem:[%s4] sm:$0xff] %v465
    %482 = vst [vmem:[%s4 + $0x8] sm:$0xff] %v466
    %483 = vst [vmem:[%s4 + $0x10] sm:$0xff] %v467
    %484 = vst [vmem:[%s4 + $0x18] sm:$0xff] %v468
    %485 = vst [vmem:[%s4 + $0x20] sm:$0xff] %v469
    %486 = vst [vmem:[%s4 + $0x28] sm:$0xff] %v470
    %487 = vst [vmem:[%s4 + $0x30] sm:$0xff] %v471
    %488 = vst [vmem:[%s4 + $0x38] sm:$0xff] %v472
    %489 = vst [vmem:[%s4 + $0x40] sm:$0xff] %v473
    %490 = vst [vmem:[%s4 + $0x48] sm:$0xff] %v474
    %491 = vst [vmem:[%s4 + $0x50] sm:$0xff] %v475
    %492 = vst [vmem:[%s4 + $0x58] sm:$0xff] %v476
    %493 = vst [vmem:[%s4 + $0x60] sm:$0xff] %v477
    %494 = vst [vmem:[%s4 + $0x68] sm:$0xff] %v478
    %495 = vst [vmem:[%s4 + $0x70] sm:$0xff] %v479
    %496 = vst [vmem:[%s4 + $0x78] sm:$0xff] %v480
  $region25: #{noisy_embedding.3} parent=0 // pred_fallthru
    _
  // Predicated region
  $region26: #{noisy_embedding.3} parent=0 // pred_check
    _
  $region27: #{noisy_embedding.3} parent=0 // pred_check_branch
    %498 = sbr.rel (0) target = $region29
  $region28: #{noisy_embedding.3} parent=0 // pred_region
    _
  $region29: #{noisy_embedding.3} parent=0 // pred_fallthru
    _
  // Predicated region
  $region30: #{noisy_embedding.3} parent=0 // pred_check
    _
  $region31: #{noisy_embedding.3} parent=0 // pred_check_branch
    %500 = sbr.rel (0) target = $region33
  $region32: #{noisy_embedding.3} parent=0 // pred_region
    _
  $region33: #{noisy_embedding.3} parent=0 // pred_fallthru
    _

</llo_original>
